<compile_context>
chip_gen: v7x
topology: tpu7x:2x2x1
jax: 0.10.0
libtpu: 0.0.40
codegen_flags: <defaults>
</compile_context>

<pallas_src>
import functools

import jax
import jax.numpy as jnp
from jax.experimental import pallas as pl
from jax.experimental.pallas import tpu as pltpu

_LANE = 128
_SUBLANE = 8
_MiB = 1 << 20


def _round_up(x, m):
    return (x + m - 1) // m * m


def _pad2(a, rows, cols):
    r, c = a.shape
    return jnp.pad(a, ((0, rows - r), (0, cols - c)))


@functools.lru_cache(maxsize=None)
def _device_kind():
    try:
        return jax.devices()[0].device_kind.lower()
    except Exception:
        return ""


@functools.lru_cache(maxsize=None)
def _is_v5e():
    kind = _device_kind()
    return ("v5 lite" in kind) or ("v5e" in kind) or ("v5litepod" in kind)


@functools.lru_cache(maxsize=None)
def _vmem_capacity_bytes():
    try:
        return int(pltpu.get_tpu_info().vmem_capacity_bytes)
    except Exception:
        return 64 * _MiB  # conservative: v7x per-TensorCore VMEM


@functools.lru_cache(maxsize=None)
def _buffered_one_supported():
    """One-time AOT probe: does this Pallas build accept pipeline_mode=Buffered(1)?"""
    def probe_kernel(x_ref, w_ref, o_ref):
        o_ref[...] = x_ref[...] + w_ref[...]

    try:
        fn = pl.pallas_call(
            probe_kernel,
            out_shape=jax.ShapeDtypeStruct((16, _LANE), jnp.float32),
            grid_spec=pltpu.PrefetchScalarGridSpec(
                num_scalar_prefetch=0,
                grid=(2,),
                in_specs=[
                    pl.BlockSpec((8, _LANE), lambda i: (i, 0)),
                    pl.BlockSpec((8, _LANE), lambda i: (0, 0),
                                 pipeline_mode=pl.Buffered(1)),
                ],
                out_specs=pl.BlockSpec((8, _LANE), lambda i: (i, 0)),
            ),
        )
        jax.jit(fn).lower(
            jax.ShapeDtypeStruct((16, _LANE), jnp.float32),
            jax.ShapeDtypeStruct((8, _LANE), jnp.float32),
        ).compile()
        return True
    except Exception:
        return False


def _mlp_kernel(x_ref,
                w1_ref, b1_ref, w2_ref, b2_ref, w3_ref, b3_ref,
                w4_ref, b4_ref, w5_ref, b5_ref,
                o_ref, *, act_dtype):
    """Fused 5-layer MLP forward for one [tile_b, in_p] batch tile."""
    mxu_dtype = w1_ref.dtype  # bf16 by default (f32 when compute_dtype=f32)

    def dense(h, w_ref, b_ref):
        # MXU matmul with f32 accumulation; bias broadcast over batch sublanes.
        return jnp.dot(h, w_ref[...], preferred_element_type=jnp.float32) + b_ref[...]

    def act(z):
        # sigmoid(z) == 0.5*tanh(z/2) + 0.5 : one EUP op per element.  On
        # v6e/v7x the whole activation runs in bf16 (EUP/VPU bf16 path); on
        # v5e act_dtype stays f32.
        zh = z.astype(act_dtype)
        return (0.5 * jnp.tanh(0.5 * zh) + 0.5).astype(mxu_dtype)

    h = act(dense(x_ref[...], w1_ref, b1_ref))   # [TB, H]
    h = act(dense(h, w2_ref, b2_ref))            # [TB, 2H]
    h = act(dense(h, w3_ref, b3_ref))            # [TB, H]
    h = act(dense(h, w4_ref, b4_ref))            # [TB, H]
    o_ref[...] = dense(h, w5_ref, b5_ref).astype(o_ref.dtype)   # [TB, H]


class PallasMLP:
    """Fused fc1..fc5 forward.  Weights are padded/cast ONCE at construction
    and kept resident in VMEM (single-buffered when the Pallas build allows)."""

    def __init__(self, params, *, compute_dtype=jnp.bfloat16,
                 out_dtype=jnp.float32, act_dtype=None):
        (w1, b1), (w2, b2), (w3, b3), (w4, b4), (w5, b5) = params
        self.in_dims = int(w1.shape[0])
        self.hidden = int(w1.shape[1])
        self.out_dim = int(w5.shape[1])
        self.compute_dtype = jnp.dtype(compute_dtype)
        self.out_dtype = jnp.dtype(out_dtype)
        if act_dtype is None:
            # bf16 activations on v6e/v7x; f32 on v5e (no bf16 VPU/EUP) or when
            # the whole kernel runs in f32.
            act_dtype = (jnp.float32
                         if (_is_v5e() or self.compute_dtype == jnp.dtype(jnp.float32))
                         else jnp.bfloat16)
        self.act_dtype = jnp.dtype(act_dtype)

        # Lane-dense feature padding: padded weight rows/cols and biases are
        # zero, so padded lanes never leak into real outputs.
        # (For hidden dims > 128 on v6e/v7x, aligning to 256 would fill the
        #  256-wide MXU; for this 32/64-wide model 128 is the right minimum.)
        self.in_p = _round_up(self.in_dims, _LANE)
        self.h_p = _round_up(self.hidden, _LANE)
        self.h2_p = _round_up(2 * self.hidden, _LANE)
        self.out_p = _round_up(self.out_dim, _LANE)

        padded = [
            (_pad2(w1, self.in_p, self.h_p),  _pad2(b1, 1, self.h_p)),
            (_pad2(w2, self.h_p, self.h2_p),  _pad2(b2, 1, self.h2_p)),
            (_pad2(w3, self.h2_p, self.h_p),  _pad2(b3, 1, self.h_p)),
            (_pad2(w4, self.h_p, self.h_p),   _pad2(b4, 1, self.h_p)),
            (_pad2(w5, self.h_p, self.out_p), _pad2(b5, 1, self.out_p)),
        ]
        args = []
        for w, b in padded:
            args.append(jnp.asarray(w, self.compute_dtype))   # MXU operand dtype
            args.append(jnp.asarray(b, jnp.float32))           # bias add stays f32
        self.weight_args = tuple(jax.device_put(a) for a in args)
        self.weight_shapes = tuple(a.shape for a in self.weight_args)

        self._w_elems = (self.in_p * self.h_p + self.h_p * self.h2_p
                         + self.h2_p * self.h_p + self.h_p * self.h_p
                         + self.h_p * self.out_p)
        self._b_elems = 3 * self.h_p + self.h2_p + self.out_p

        self._buffered_one = _buffered_one_supported()
        self._vmem_budget = int(0.75 * _vmem_capacity_bytes())
        self._calls = {}   # batch size -> jitted (pad -> pallas_call -> slice)

    # ---- sizing -----------------------------------------------------------

    def _vmem_estimate(self, tile_b):
        cdt = self.compute_dtype.itemsize
        odt = self.out_dtype.itemsize
        wbuf = 1 if self._buffered_one else 2      # fallback path: 2x weight bytes
        return (wbuf * (self._w_elems * cdt + self._b_elems * 4)
                + 2 * tile_b * self.in_p * cdt      # x tile, double-buffered
                + 2 * tile_b * self.out_p * odt     # out tile, double-buffered
                + 4 * tile_b * max(self.h_p, self.h2_p) * 4)  # live f32 intermediates

    def _choose_tile_b(self, batch):
        b8 = _round_up(max(batch, 1), _SUBLANE)
        cands = sorted({c for c in (2048, 1024, 512, 256, 128, 64, 32, 16, 8)
                        if c <= b8} | {b8}, reverse=True)
        largest_fitting = None
        for t in cands:
            if self._vmem_estimate(t) > self._vmem_budget:
                continue
            b_p = _round_up(batch, t)
            if largest_fitting is None:
                largest_fitting = (t, b_p)
            if (b_p - batch) / b_p <= 0.125:        # bound batch-padding waste
                return t, b_p
        if largest_fitting is not None:
            return largest_fitting
        return b8, _round_up(batch, b8)

    # ---- build / call -----------------------------------------------------

    def _build(self, batch):
        tile_b, b_p = self._choose_tile_b(batch)
        grid = (b_p // tile_b,)
        mode = pl.Buffered(1) if self._buffered_one else None

        def resident(shape):
            # Whole (small) weight/bias array resident in VMEM, same block every
            # grid step; Buffered(1) drops the default 2x double buffering.
            if mode is None:
                return pl.BlockSpec(shape, lambda i: (0,) * len(shape))
            return pl.BlockSpec(shape, lambda i: (0,) * len(shape),
                                pipeline_mode=mode)

        in_specs = [pl.BlockSpec((tile_b, self.in_p), lambda i: (i, 0))]
        for shape in self.weight_shapes:
            in_specs.append(resident(shape))
        out_spec = pl.BlockSpec((tile_b, self.out_p), lambda i: (i, 0))

        cdt = self.compute_dtype.itemsize
        odt = self.out_dtype.itemsize
        flops = 2 * b_p * self._w_elems
        transcendentals = b_p * (3 * self.h_p + self.h2_p)
        bytes_accessed = (b_p * self.in_p * cdt + b_p * self.out_p * odt
                          + self._w_elems * cdt + self._b_elems * 4)
        vmem_limit = int(min(self._vmem_budget,
                             max(4 * self._vmem_estimate(tile_b), 16 * _MiB)))

        call = pl.pallas_call(
            functools.partial(_mlp_kernel, act_dtype=self.act_dtype),
            out_shape=jax.ShapeDtypeStruct((b_p, self.out_p), self.out_dtype),
            grid_spec=pltpu.PrefetchScalarGridSpec(
                num_scalar_prefetch=0,
                grid=grid,
                in_specs=in_specs,
                out_specs=out_spec,
            ),
            compiler_params=pltpu.CompilerParams(
                dimension_semantics=("parallel",),
                vmem_limit_bytes=vmem_limit,
            ),
            cost_estimate=pl.CostEstimate(
                flops=flops,
                transcendentals=transcendentals,
                bytes_accessed=bytes_accessed,
            ),
        )

        in_dims, in_p, out_dim = self.in_dims, self.in_p, self.out_dim
        cdtype = self.compute_dtype

        @jax.jit
        def fwd(x, *wb):
            x_p = jnp.pad(x, ((0, b_p - x.shape[0]), (0, in_p - in_dims)))
            out = call(x_p.astype(cdtype), *wb)
            return out[:x.shape[0], :out_dim]

        return fwd

    def __call__(self, x):
        batch = x.shape[0]
        fwd = self._calls.get(batch)
        if fwd is None:
            fwd = self._build(batch)
            self._calls[batch] = fwd
        return fwd(x, *self.weight_args)


# ---- reference / init -----------------------------------------------------

def init_mlp_params(key, in_dims, hidden_dim):
    """Mimic torch.nn.Linear default init. Weights [in, out]; biases [1, out]."""
    dims = [
        (in_dims, hidden_dim),          # fc1
        (hidden_dim, 2 * hidden_dim),   # fc2
        (2 * hidden_dim, hidden_dim),   # fc3
        (hidden_dim, hidden_dim),       # fc4
        (hidden_dim, hidden_dim),       # fc5
    ]
    params = []
    for fan_in, fan_out in dims:
        key, kw, kb = jax.random.split(key, 3)
        bound = 1.0 / (fan_in ** 0.5)
        w = jax.random.uniform(kw, (fan_in, fan_out), jnp.float32, -bound, bound)
        b = jax.random.uniform(kb, (1, fan_out), jnp.float32, -bound, bound)
        params.append((w, b))
    return params


def mlp_reference(x, params, compute_dtype=jnp.float32):
    """Pure-JAX reference (optionally with the same bf16 operand quantization)."""
    h = x.astype(compute_dtype)
    n = len(params)
    for i, (w, b) in enumerate(params):
        z = jnp.dot(h, w.astype(compute_dtype),
                    preferred_element_type=jnp.float32) + b.astype(jnp.float32)
        h = jax.nn.sigmoid(z).astype(compute_dtype) if i < n - 1 else z
    return h


if __name__ == "__main__":
    in_dims, hidden_dim = 32, 32
    key = jax.random.PRNGKey(0)
    key, kx = jax.random.split(key)
    params = init_mlp_params(key, in_dims, hidden_dim)

    # 1) Small-batch f32 end-to-end check against the pure-JAX module forward.
    mlp_f32 = PallasMLP(params, compute_dtype=jnp.float32)
    x_small = jax.random.normal(kx, (8, in_dims), jnp.float32)
    out_f32 = jax.block_until_ready(mlp_f32(x_small))
    ref_f32 = mlp_reference(x_small, params)
    assert out_f32.shape == (8, hidden_dim)
    err_f32 = float(jnp.max(jnp.abs(out_f32 - ref_f32)))
    assert err_f32 < 1e-3, err_f32

    # 2) Larger batch on the default bf16 MXU path (bf16 activations on
    #    v6e/v7x, f32 on v5e), compared against an identically-quantized ref.
    mlp_bf16 = PallasMLP(params)
    key, kb = jax.random.split(key)
    x_big = jax.random.normal(kb, (512, in_dims), jnp.float32)
    out_bf16 = jax.block_until_ready(mlp_bf16(x_big))
    # Second call hits the cached compiled forward (no re-trace, no weight prep).
    out_bf16 = jax.block_until_ready(mlp_bf16(x_big))
    ref_bf16 = mlp_reference(x_big, params, jnp.bfloat16)
    assert out_bf16.shape == (512, hidden_dim)
    err_bf16 = float(jnp.max(jnp.abs(out_bf16.astype(jnp.float32)
                                     - ref_bf16.astype(jnp.float32))))
    assert err_bf16 < 3e-2, err_bf16

    print("KERNEL_OK")
</pallas_src>

<mosaic_0001>
module attributes {stable_mosaic.version = 11 : i64} {
  func.func @_mlp_kernel(%arg0: i32, %arg1: memref<8x128xf32, #tpu.memory_space<vmem>>, %arg2: memref<128x128xf32, #tpu.memory_space<vmem>>, %arg3: memref<1x128xf32, #tpu.memory_space<vmem>>, %arg4: memref<128x128xf32, #tpu.memory_space<vmem>>, %arg5: memref<1x128xf32, #tpu.memory_space<vmem>>, %arg6: memref<128x128xf32, #tpu.memory_space<vmem>>, %arg7: memref<1x128xf32, #tpu.memory_space<vmem>>, %arg8: memref<128x128xf32, #tpu.memory_space<vmem>>, %arg9: memref<1x128xf32, #tpu.memory_space<vmem>>, %arg10: memref<128x128xf32, #tpu.memory_space<vmem>>, %arg11: memref<1x128xf32, #tpu.memory_space<vmem>>, %arg12: memref<8x128xf32, #tpu.memory_space<vmem>>) attributes {dimension_semantics = [#tpu.dimension_semantics<parallel>], iteration_bounds = array<i64: 1>, scalar_prefetch = 0 : i64, scratch_operands = 0 : i64, tpu.core_type = #tpu.core_type<tc>, window_params = [{transform_indices = @transform_0, window_bounds = array<i64: 8, 128>}, {pipeline_mode = #tpu.pipeline_mode<synchronous>, transform_indices = @transform_1, window_bounds = array<i64: 128, 128>}, {pipeline_mode = #tpu.pipeline_mode<synchronous>, transform_indices = @transform_2, window_bounds = array<i64: 1, 128>}, {pipeline_mode = #tpu.pipeline_mode<synchronous>, transform_indices = @transform_3, window_bounds = array<i64: 128, 128>}, {pipeline_mode = #tpu.pipeline_mode<synchronous>, transform_indices = @transform_4, window_bounds = array<i64: 1, 128>}, {pipeline_mode = #tpu.pipeline_mode<synchronous>, transform_indices = @transform_5, window_bounds = array<i64: 128, 128>}, {pipeline_mode = #tpu.pipeline_mode<synchronous>, transform_indices = @transform_6, window_bounds = array<i64: 1, 128>}, {pipeline_mode = #tpu.pipeline_mode<synchronous>, transform_indices = @transform_7, window_bounds = array<i64: 128, 128>}, {pipeline_mode = #tpu.pipeline_mode<synchronous>, transform_indices = @transform_8, window_bounds = array<i64: 1, 128>}, {pipeline_mode = #tpu.pipeline_mode<synchronous>, transform_indices = @transform_9, window_bounds = array<i64: 128, 128>}, {pipeline_mode = #tpu.pipeline_mode<synchronous>, transform_indices = @transform_10, window_bounds = array<i64: 1, 128>}, {transform_indices = @transform_11, window_bounds = array<i64: 8, 128>}]} {
    %c0 = arith.constant 0 : index
    %c0_0 = arith.constant 0 : index
    %0 = vector.load %arg1[%c0, %c0_0] : memref<8x128xf32, #tpu.memory_space<vmem>>, vector<8x128xf32>
    %c0_1 = arith.constant 0 : index
    %c0_2 = arith.constant 0 : index
    %1 = vector.load %arg2[%c0_1, %c0_2] : memref<128x128xf32, #tpu.memory_space<vmem>>, vector<128x128xf32>
    %cst = arith.constant dense<0.000000e+00> : vector<8x128xf32>
    %2 = tpu.matmul %0, %1, %cst {dimension_numbers = #tpu.dot_dimension_numbers<[1], [0], [0], [1], [0, 0, 1, 1], [], []>} : vector<8x128xf32>, vector<128x128xf32>, vector<8x128xf32> -> vector<8x128xf32>
    %c0_3 = arith.constant 0 : index
    %c0_4 = arith.constant 0 : index
    %3 = vector.load %arg3[%c0_3, %c0_4] : memref<1x128xf32, #tpu.memory_space<vmem>>, vector<1x128xf32>
    %4 = vector.broadcast %3 : vector<1x128xf32> to vector<8x128xf32>
    %5 = arith.addf %2, %4 : vector<8x128xf32>
    %cst_5 = arith.constant 5.000000e-01 : f32
    %6 = vector.broadcast %cst_5 : f32 to vector<8x128xf32>
    %7 = arith.mulf %6, %5 : vector<8x128xf32>
    %8 = math.tanh %7 : vector<8x128xf32>
    %cst_6 = arith.constant 5.000000e-01 : f32
    %9 = vector.broadcast %cst_6 : f32 to vector<8x128xf32>
    %10 = arith.mulf %9, %8 : vector<8x128xf32>
    %cst_7 = arith.constant 5.000000e-01 : f32
    %11 = vector.broadcast %cst_7 : f32 to vector<8x128xf32>
    %12 = arith.addf %10, %11 : vector<8x128xf32>
    %c0_8 = arith.constant 0 : index
    %c0_9 = arith.constant 0 : index
    %13 = vector.load %arg4[%c0_8, %c0_9] : memref<128x128xf32, #tpu.memory_space<vmem>>, vector<128x128xf32>
    %cst_10 = arith.constant dense<0.000000e+00> : vector<8x128xf32>
    %14 = tpu.matmul %12, %13, %cst_10 {dimension_numbers = #tpu.dot_dimension_numbers<[1], [0], [0], [1], [0, 0, 1, 1], [], []>} : vector<8x128xf32>, vector<128x128xf32>, vector<8x128xf32> -> vector<8x128xf32>
    %c0_11 = arith.constant 0 : index
    %c0_12 = arith.constant 0 : index
    %15 = vector.load %arg5[%c0_11, %c0_12] : memref<1x128xf32, #tpu.memory_space<vmem>>, vector<1x128xf32>
    %16 = vector.broadcast %15 : vector<1x128xf32> to vector<8x128xf32>
    %17 = arith.addf %14, %16 : vector<8x128xf32>
    %cst_13 = arith.constant 5.000000e-01 : f32
    %18 = vector.broadcast %cst_13 : f32 to vector<8x128xf32>
    %19 = arith.mulf %18, %17 : vector<8x128xf32>
    %20 = math.tanh %19 : vector<8x128xf32>
    %cst_14 = arith.constant 5.000000e-01 : f32
    %21 = vector.broadcast %cst_14 : f32 to vector<8x128xf32>
    %22 = arith.mulf %21, %20 : vector<8x128xf32>
    %cst_15 = arith.constant 5.000000e-01 : f32
    %23 = vector.broadcast %cst_15 : f32 to vector<8x128xf32>
    %24 = arith.addf %22, %23 : vector<8x128xf32>
    %c0_16 = arith.constant 0 : index
    %c0_17 = arith.constant 0 : index
    %25 = vector.load %arg6[%c0_16, %c0_17] : memref<128x128xf32, #tpu.memory_space<vmem>>, vector<128x128xf32>
    %cst_18 = arith.constant dense<0.000000e+00> : vector<8x128xf32>
    %26 = tpu.matmul %24, %25, %cst_18 {dimension_numbers = #tpu.dot_dimension_numbers<[1], [0], [0], [1], [0, 0, 1, 1], [], []>} : vector<8x128xf32>, vector<128x128xf32>, vector<8x128xf32> -> vector<8x128xf32>
    %c0_19 = arith.constant 0 : index
    %c0_20 = arith.constant 0 : index
    %27 = vector.load %arg7[%c0_19, %c0_20] : memref<1x128xf32, #tpu.memory_space<vmem>>, vector<1x128xf32>
    %28 = vector.broadcast %27 : vector<1x128xf32> to vector<8x128xf32>
    %29 = arith.addf %26, %28 : vector<8x128xf32>
    %cst_21 = arith.constant 5.000000e-01 : f32
    %30 = vector.broadcast %cst_21 : f32 to vector<8x128xf32>
    %31 = arith.mulf %30, %29 : vector<8x128xf32>
    %32 = math.tanh %31 : vector<8x128xf32>
    %cst_22 = arith.constant 5.000000e-01 : f32
    %33 = vector.broadcast %cst_22 : f32 to vector<8x128xf32>
    %34 = arith.mulf %33, %32 : vector<8x128xf32>
    %cst_23 = arith.constant 5.000000e-01 : f32
    %35 = vector.broadcast %cst_23 : f32 to vector<8x128xf32>
    %36 = arith.addf %34, %35 : vector<8x128xf32>
    %c0_24 = arith.constant 0 : index
    %c0_25 = arith.constant 0 : index
    %37 = vector.load %arg8[%c0_24, %c0_25] : memref<128x128xf32, #tpu.memory_space<vmem>>, vector<128x128xf32>
    %cst_26 = arith.constant dense<0.000000e+00> : vector<8x128xf32>
    %38 = tpu.matmul %36, %37, %cst_26 {dimension_numbers = #tpu.dot_dimension_numbers<[1], [0], [0], [1], [0, 0, 1, 1], [], []>} : vector<8x128xf32>, vector<128x128xf32>, vector<8x128xf32> -> vector<8x128xf32>
    %c0_27 = arith.constant 0 : index
    %c0_28 = arith.constant 0 : index
    %39 = vector.load %arg9[%c0_27, %c0_28] : memref<1x128xf32, #tpu.memory_space<vmem>>, vector<1x128xf32>
    %40 = vector.broadcast %39 : vector<1x128xf32> to vector<8x128xf32>
    %41 = arith.addf %38, %40 : vector<8x128xf32>
    %cst_29 = arith.constant 5.000000e-01 : f32
    %42 = vector.broadcast %cst_29 : f32 to vector<8x128xf32>
    %43 = arith.mulf %42, %41 : vector<8x128xf32>
    %44 = math.tanh %43 : vector<8x128xf32>
    %cst_30 = arith.constant 5.000000e-01 : f32
    %45 = vector.broadcast %cst_30 : f32 to vector<8x128xf32>
    %46 = arith.mulf %45, %44 : vector<8x128xf32>
    %cst_31 = arith.constant 5.000000e-01 : f32
    %47 = vector.broadcast %cst_31 : f32 to vector<8x128xf32>
    %48 = arith.addf %46, %47 : vector<8x128xf32>
    %c0_32 = arith.constant 0 : index
    %c0_33 = arith.constant 0 : index
    %49 = vector.load %arg10[%c0_32, %c0_33] : memref<128x128xf32, #tpu.memory_space<vmem>>, vector<128x128xf32>
    %cst_34 = arith.constant dense<0.000000e+00> : vector<8x128xf32>
    %50 = tpu.matmul %48, %49, %cst_34 {dimension_numbers = #tpu.dot_dimension_numbers<[1], [0], [0], [1], [0, 0, 1, 1], [], []>} : vector<8x128xf32>, vector<128x128xf32>, vector<8x128xf32> -> vector<8x128xf32>
    %c0_35 = arith.constant 0 : index
    %c0_36 = arith.constant 0 : index
    %51 = vector.load %arg11[%c0_35, %c0_36] : memref<1x128xf32, #tpu.memory_space<vmem>>, vector<1x128xf32>
    %52 = vector.broadcast %51 : vector<1x128xf32> to vector<8x128xf32>
    %53 = arith.addf %50, %52 : vector<8x128xf32>
    %c0_37 = arith.constant 0 : index
    %c0_38 = arith.constant 0 : index
    %54 = vector.load %arg12[%c0_37, %c0_38] : memref<8x128xf32, #tpu.memory_space<vmem>>, vector<8x128xf32>
    tpu.vector_store %arg12[%c0_37, %c0_38], %53 {strides = array<i32>} : memref<8x128xf32, #tpu.memory_space<vmem>>, vector<8x128xf32>,
    return
  }
  func.func @transform_0(%arg0: i32) -> (i32, i32) {
    %c0_i32 = arith.constant 0 : i32
    %c0_i32_0 = arith.constant 0 : i32
    return %arg0, %c0_i32 : i32, i32
  }
  func.func @transform_1(%arg0: i32) -> (i32, i32) {
    %c0_i32 = arith.constant 0 : i32
    %c0_i32_0 = arith.constant 0 : i32
    %c0_i32_1 = arith.constant 0 : i32
    return %c0_i32, %c0_i32_0 : i32, i32
  }
  func.func @transform_2(%arg0: i32) -> (i32, i32) {
    %c0_i32 = arith.constant 0 : i32
    %c0_i32_0 = arith.constant 0 : i32
    %c0_i32_1 = arith.constant 0 : i32
    return %c0_i32, %c0_i32_0 : i32, i32
  }
  func.func @transform_3(%arg0: i32) -> (i32, i32) {
    %c0_i32 = arith.constant 0 : i32
    %c0_i32_0 = arith.constant 0 : i32
    %c0_i32_1 = arith.constant 0 : i32
    return %c0_i32, %c0_i32_0 : i32, i32
  }
  func.func @transform_4(%arg0: i32) -> (i32, i32) {
    %c0_i32 = arith.constant 0 : i32
    %c0_i32_0 = arith.constant 0 : i32
    %c0_i32_1 = arith.constant 0 : i32
    return %c0_i32, %c0_i32_0 : i32, i32
  }
  func.func @transform_5(%arg0: i32) -> (i32, i32) {
    %c0_i32 = arith.constant 0 : i32
    %c0_i32_0 = arith.constant 0 : i32
    %c0_i32_1 = arith.constant 0 : i32
    return %c0_i32, %c0_i32_0 : i32, i32
  }
  func.func @transform_6(%arg0: i32) -> (i32, i32) {
    %c0_i32 = arith.constant 0 : i32
    %c0_i32_0 = arith.constant 0 : i32
    %c0_i32_1 = arith.constant 0 : i32
    return %c0_i32, %c0_i32_0 : i32, i32
  }
  func.func @transform_7(%arg0: i32) -> (i32, i32) {
    %c0_i32 = arith.constant 0 : i32
    %c0_i32_0 = arith.constant 0 : i32
    %c0_i32_1 = arith.constant 0 : i32
    return %c0_i32, %c0_i32_0 : i32, i32
  }
  func.func @transform_8(%arg0: i32) -> (i32, i32) {
    %c0_i32 = arith.constant 0 : i32
    %c0_i32_0 = arith.constant 0 : i32
    %c0_i32_1 = arith.constant 0 : i32
    return %c0_i32, %c0_i32_0 : i32, i32
  }
  func.func @transform_9(%arg0: i32) -> (i32, i32) {
    %c0_i32 = arith.constant 0 : i32
    %c0_i32_0 = arith.constant 0 : i32
    %c0_i32_1 = arith.constant 0 : i32
    return %c0_i32, %c0_i32_0 : i32, i32
  }
  func.func @transform_10(%arg0: i32) -> (i32, i32) {
    %c0_i32 = arith.constant 0 : i32
    %c0_i32_0 = arith.constant 0 : i32
    %c0_i32_1 = arith.constant 0 : i32
    return %c0_i32, %c0_i32_0 : i32, i32
  }
  func.func @transform_11(%arg0: i32) -> (i32, i32) {
    %c0_i32 = arith.constant 0 : i32
    %c0_i32_0 = arith.constant 0 : i32
    return %arg0, %c0_i32 : i32, i32
  }
}

</mosaic_0001>

<llo_original>
// kernel: fwd.1
$region0: #{fwd.1}
  #allocation0 [shape = 'u32[]', space=smem, size = 0x4, offset = 0x4, fixed_abs, tag = 'smem constant byte address 0x4 - core index']
  #allocation1 [shape = 'u32[144,128]{1,0:T(1,128)}', space=vmem, size = 0x12000, scoped, tag = 'internal scratch']
  %s0 = inlined_call_operand.vmem [shape: f32[8,128], index: 0, kind: input, shape index: {}]
  %s1 = inlined_call_operand.hbm [shape: f32[128,128], index: 1, kind: input, shape index: {}]
  %s2 = inlined_call_operand.vmem [shape: f32[1,128], index: 2, kind: input, shape index: {}]
  %s3 = inlined_call_operand.hbm [shape: f32[128,128], index: 3, kind: input, shape index: {}]
  %s4 = inlined_call_operand.vmem [shape: f32[1,128], index: 4, kind: input, shape index: {}]
  %s5 = inlined_call_operand.hbm [shape: f32[128,128], index: 5, kind: input, shape index: {}]
  %s6 = inlined_call_operand.vmem [shape: f32[1,128], index: 6, kind: input, shape index: {}]
  %s7 = inlined_call_operand.hbm [shape: f32[128,128], index: 7, kind: input, shape index: {}]
  %s8 = inlined_call_operand.vmem [shape: f32[1,128], index: 8, kind: input, shape index: {}]
  %s9 = inlined_call_operand.hbm [shape: f32[128,128], index: 9, kind: input, shape index: {}]
  %s10 = inlined_call_operand.vmem [shape: f32[1,128], index: 10, kind: input, shape index: {}]
  %s11 = inlined_call_operand.hbm [shape: f32[8,128], index: 11, kind: output, shape index: {}]
  %s12 = sld [smem:[#allocation0]]
  $region74: #{fwd.1} parent=0
    _
  %s14 = ssub.s32 1, %s12
  %s15 = scalar_select 0, %s14, %s12
  $region1: #{fwd.1} parent=0
    #allocation2 [shape = 'u8[65536]{0}', space=vmem, size = 0x10000, scoped, tag = 'input window, operand 1, single buffered']
    #allocation3 [shape = 's32[1]{0}', space=sflag, size = 0x4, scoped, tag = 'scoped memory for fwd.1']
    #allocation4 [shape = 's32[1]{0}', space=sflag, size = 0x4, scoped, tag = 'scoped memory for fwd.1']
    #allocation5 [shape = 'u8[65536]{0}', space=vmem, size = 0x10000, scoped, tag = 'input window, operand 3, single buffered']
    #allocation6 [shape = 's32[1]{0}', space=sflag, size = 0x4, scoped, tag = 'scoped memory for fwd.1']
    #allocation7 [shape = 'u8[65536]{0}', space=vmem, size = 0x10000, scoped, tag = 'input window, operand 5, single buffered']
    #allocation8 [shape = 'u8[65536]{0}', space=vmem, size = 0x10000, scoped, tag = 'input window, operand 7, single buffered']
    #allocation9 [shape = 's32[1]{0}', space=sflag, size = 0x4, scoped, tag = 'scoped memory for fwd.1']
    #allocation10 [shape = 'u8[65536]{0}', space=vmem, size = 0x10000, scoped, tag = 'input window, operand 9, single buffered']
    #allocation11 [shape = 'u8[4096]{0}', space=vmem, size = 0x1000, scoped, tag = 'output window, operand 0, single buffered']
    %16 = vsyncpa [#allocation3], 0
    %17 = vsyncpa [#allocation6], 0
    %18 = vsyncpa [#allocation9], 0
    %19 = vsyncpa [#allocation4], 0
    // Predicated region
    $region2: #{fwd.1} parent=1 // pred_check
      _
    $region3: #{fwd.1} parent=1 // pred_check_branch
      %21 = sbr.rel (0) target = $region5
    $region4: #{fwd.1} parent=1 // pred_region
      _
    $region5: #{fwd.1} parent=1 // pred_fallthru
      _
    // Predicated region
    $region6: #{fwd.1} parent=1 // pred_check
      _
    $region7: #{fwd.1} parent=1 // pred_check_branch
      %23 = sbr.rel (0) target = $region9
    $region8: #{fwd.1} parent=1 // pred_region
      %s25 = ssub.s32 2048, 2048
      %26 = vsyncadd [#allocation3], %s25
      %s27 = sshll.u32 [#allocation2], 4
      %s28 = int_to_ptr.vmem [resolvable:$true] %s27
      %33 = dma.hbm_to_vmem [thread:$0]  %s1, 2048, %s28, [#allocation3], 128, 128, 8
    $region9: #{fwd.1} parent=1 // pred_fallthru
      _
    // Predicated region
    $region10: #{fwd.1} parent=1 // pred_check
      _
    $region11: #{fwd.1} parent=1 // pred_check_branch
      %35 = sbr.rel (0) target = $region13
    $region12: #{fwd.1} parent=1 // pred_region
      _
    $region13: #{fwd.1} parent=1 // pred_fallthru
      _
    // Predicated region
    $region14: #{fwd.1} parent=1 // pred_check
      _
    $region15: #{fwd.1} parent=1 // pred_check_branch
      %37 = sbr.rel (0) target = $region17
    $region16: #{fwd.1} parent=1 // pred_region
      %s39 = ssub.s32 2048, 2048
      %40 = vsyncadd [#allocation6], %s39
      %s41 = sshll.u32 [#allocation5], 4
      %s42 = int_to_ptr.vmem [resolvable:$true] %s41
      %47 = dma.hbm_to_vmem [thread:$0]  %s3, 2048, %s42, [#allocation6], 128, 128, 8
    $region17: #{fwd.1} parent=1 // pred_fallthru
      _
    // Predicated region
    $region18: #{fwd.1} parent=1 // pred_check
      _
    $region19: #{fwd.1} parent=1 // pred_check_branch
      %49 = sbr.rel (0) target = $region21
    $region20: #{fwd.1} parent=1 // pred_region
      _
    $region21: #{fwd.1} parent=1 // pred_fallthru
      _
    // Predicated region
    $region22: #{fwd.1} parent=1 // pred_check
      _
    $region23: #{fwd.1} parent=1 // pred_check_branch
      %51 = sbr.rel (0) target = $region25
    $region24: #{fwd.1} parent=1 // pred_region
      %s53 = ssub.s32 2048, 2048
      %54 = vsyncadd [#allocation6], %s53
      %s55 = sshll.u32 [#allocation7], 4
      %s56 = int_to_ptr.vmem [resolvable:$true] %s55
      %61 = dma.hbm_to_vmem [thread:$0]  %s5, 2048, %s56, [#allocation6], 128, 128, 8
    $region25: #{fwd.1} parent=1 // pred_fallthru
      _
    // Predicated region
    $region26: #{fwd.1} parent=1 // pred_check
      _
    $region27: #{fwd.1} parent=1 // pred_check_branch
      %63 = sbr.rel (0) target = $region29
    $region28: #{fwd.1} parent=1 // pred_region
      _
    $region29: #{fwd.1} parent=1 // pred_fallthru
      _
    // Predicated region
    $region30: #{fwd.1} parent=1 // pred_check
      _
    $region31: #{fwd.1} parent=1 // pred_check_branch
      %65 = sbr.rel (0) target = $region33
    $region32: #{fwd.1} parent=1 // pred_region
      %s67 = ssub.s32 2048, 2048
      %68 = vsyncadd [#allocation9], %s67
      %s69 = sshll.u32 [#allocation8], 4
      %s70 = int_to_ptr.vmem [resolvable:$true] %s69
      %75 = dma.hbm_to_vmem [thread:$0]  %s7, 2048, %s70, [#allocation9], 128, 128, 8
    $region33: #{fwd.1} parent=1 // pred_fallthru
      _
    // Predicated region
    $region34: #{fwd.1} parent=1 // pred_check
      _
    $region35: #{fwd.1} parent=1 // pred_check_branch
      %77 = sbr.rel (0) target = $region37
    $region36: #{fwd.1} parent=1 // pred_region
      _
    $region37: #{fwd.1} parent=1 // pred_fallthru
      _
    // Predicated region
    $region38: #{fwd.1} parent=1 // pred_check
      _
    $region39: #{fwd.1} parent=1 // pred_check_branch
      %79 = sbr.rel (0) target = $region41
    $region40: #{fwd.1} parent=1 // pred_region
      %s81 = ssub.s32 2048, 2048
      %82 = vsyncadd [#allocation9], %s81
      %s83 = sshll.u32 [#allocation10], 4
      %s84 = int_to_ptr.vmem [resolvable:$true] %s83
      %89 = dma.hbm_to_vmem [thread:$0]  %s9, 2048, %s84, [#allocation9], 128, 128, 8
    $region41: #{fwd.1} parent=1 // pred_fallthru
      _
    // Predicated region
    $region42: #{fwd.1} parent=1 // pred_check
      _
    $region43: #{fwd.1} parent=1 // pred_check_branch
      %91 = sbr.rel (0) target = $region45
    $region44: #{fwd.1} parent=1 // pred_region
      _
    $region45: #{fwd.1} parent=1 // pred_fallthru
      _
    // Predicated region
    $region46: #{fwd.1} parent=1 // pred_check
      _
    $region47: #{fwd.1} parent=1 // pred_check_branch
      %93 = sbr.rel (0) target = $region49
    $region48: #{fwd.1} parent=1 // pred_region
      %94 = dma.done [#allocation3], 2048
    $region49: #{fwd.1} parent=1 // pred_fallthru
      _
    // Predicated region
    $region50: #{fwd.1} parent=1 // pred_check
      _
    $region51: #{fwd.1} parent=1 // pred_check_branch
      %96 = sbr.rel (0) target = $region53
    $region52: #{fwd.1} parent=1 // pred_region
      %97 = dma.done [#allocation6], 2048
    $region53: #{fwd.1} parent=1 // pred_fallthru
      _
    // Predicated region
    $region54: #{fwd.1} parent=1 // pred_check
      _
    $region55: #{fwd.1} parent=1 // pred_check_branch
      %99 = sbr.rel (0) target = $region57
    $region56: #{fwd.1} parent=1 // pred_region
      %100 = dma.done [#allocation6], 2048
    $region57: #{fwd.1} parent=1 // pred_fallthru
      _
    // Predicated region
    $region58: #{fwd.1} parent=1 // pred_check
      _
    $region59: #{fwd.1} parent=1 // pred_check_branch
      %102 = sbr.rel (0) target = $region61
    $region60: #{fwd.1} parent=1 // pred_region
      %103 = dma.done [#allocation9], 2048
    $region61: #{fwd.1} parent=1 // pred_fallthru
      _
    // Predicated region
    $region62: #{fwd.1} parent=1 // pred_check
      _
    $region63: #{fwd.1} parent=1 // pred_check_branch
      %105 = sbr.rel (0) target = $region65
    $region64: #{fwd.1} parent=1 // pred_region
      %106 = dma.done [#allocation9], 2048
    $region65: #{fwd.1} parent=1 // pred_fallthru
      _
    %v107 = vld [vmem:[%s0] sm:$0xff]
    %v108 = vld [vmem:[#allocation2] sm:$0xff]
    %v109 = vld [vmem:[#allocation2 + $0x8] sm:$0xff]
    %v110 = vld [vmem:[#allocation2 + $0x10] sm:$0xff]
    %v111 = vld [vmem:[#allocation2 + $0x18] sm:$0xff]
    %v112 = vld [vmem:[#allocation2 + $0x20] sm:$0xff]
    %v113 = vld [vmem:[#allocation2 + $0x28] sm:$0xff]
    %v114 = vld [vmem:[#allocation2 + $0x30] sm:$0xff]
    %v115 = vld [vmem:[#allocation2 + $0x38] sm:$0xff]
    %v116 = vld [vmem:[#allocation2 + $0x40] sm:$0xff]
    %v117 = vld [vmem:[#allocation2 + $0x48] sm:$0xff]
    %v118 = vld [vmem:[#allocation2 + $0x50] sm:$0xff]
    %v119 = vld [vmem:[#allocation2 + $0x58] sm:$0xff]
    %v120 = vld [vmem:[#allocation2 + $0x60] sm:$0xff]
    %v121 = vld [vmem:[#allocation2 + $0x68] sm:$0xff]
    %v122 = vld [vmem:[#allocation2 + $0x70] sm:$0xff]
    %v123 = vld [vmem:[#allocation2 + $0x78] sm:$0xff]
    %v124 = vld [vmem:[%s2] sm:$0x1]
    %v126 = vlaneseq
    %v127 = vshrl.u32 %v126, 7
    %v128 = vsub.s32 0, %v127
    %v129 = vrot.slane %v124, %v128
    %131 = vmatprep.subr.mxu0 0.0
    %132 = vmatpush1.msra.mxu0 %v108
    %133 = vmatprep.subr.mxu0 0.0
    %134 = vmatpush1.msra.mxu0 %v109
    %135 = vmatprep.subr.mxu0 0.0
    %136 = vmatpush1.msra.mxu0 %v110
    %137 = vmatprep.subr.mxu0 0.0
    %138 = vmatpush1.msra.mxu0 %v111
    %139 = vmatprep.subr.mxu0 0.0
    %140 = vmatpush1.msra.mxu0 %v112
    %141 = vmatprep.subr.mxu0 0.0
    %142 = vmatpush1.msra.mxu0 %v113
    %143 = vmatprep.subr.mxu0 0.0
    %144 = vmatpush1.msra.mxu0 %v114
    %145 = vmatprep.subr.mxu0 0.0
    %146 = vmatpush1.msra.mxu0 %v115
    %147 = vmatprep.subr.mxu0 0.0
    %148 = vmatpush1.msra.mxu0 %v116
    %149 = vmatprep.subr.mxu0 0.0
    %150 = vmatpush1.msra.mxu0 %v117
    %151 = vmatprep.subr.mxu0 0.0
    %152 = vmatpush1.msra.mxu0 %v118
    %153 = vmatprep.subr.mxu0 0.0
    %154 = vmatpush1.msra.mxu0 %v119
    %155 = vmatprep.subr.mxu0 0.0
    %156 = vmatpush1.msra.mxu0 %v120
    %157 = vmatprep.subr.mxu0 0.0
    %158 = vmatpush1.msra.mxu0 %v121
    %159 = vmatprep.subr.mxu0 0.0
    %160 = vmatpush1.msra.mxu0 %v122
    %161 = vmatprep.subr.mxu0 0.0
    %162 = vmatpush1.msra.mxu0 %v123
    %163 = vmatprep.subr.mxu0 0.0
    %164 = vmatpush1.msra.mxu0 0.0
    %165 = vmatprep.subr.mxu0 0.0
    %166 = vmatpush1.msra.mxu0 0.0
    %167 = vmatprep.subr.mxu0 0.0
    %168 = vmatpush1.msra.mxu0 0.0
    %169 = vmatprep.subr.mxu0 0.0
    %170 = vmatpush1.msra.mxu0 0.0
    %171 = vmatprep.subr.mxu0 0.0
    %172 = vmatpush1.msra.mxu0 0.0
    %173 = vmatprep.subr.mxu0 0.0
    %174 = vmatpush1.msra.mxu0 0.0
    %175 = vmatprep.subr.mxu0 0.0
    %176 = vmatpush1.msra.mxu0 0.0
    %177 = vmatprep.subr.mxu0 0.0
    %178 = vmatpush1.msra.mxu0 0.0
    %179 = vmatprep.subr.mxu0 0.0
    %180 = vmatpush1.msra.mxu0 0.0
    %181 = vmatprep.subr.mxu0 0.0
    %182 = vmatpush1.msra.mxu0 0.0
    %183 = vmatprep.subr.mxu0 0.0
    %184 = vmatpush1.msra.mxu0 0.0
    %185 = vmatprep.subr.mxu0 0.0
    %186 = vmatpush1.msra.mxu0 0.0
    %187 = vmatprep.subr.mxu0 0.0
    %188 = vmatpush1.msra.mxu0 0.0
    %189 = vmatprep.subr.mxu0 0.0
    %190 = vmatpush1.msra.mxu0 0.0
    %191 = vmatprep.subr.mxu0 0.0
    %192 = vmatpush1.msra.mxu0 0.0
    %193 = vmatprep.subr.mxu0 0.0
    %194 = vmatpush1.msra.mxu0 0.0
    %195 = vmatprep.mubr.f32.mxu0 0.0
    %196 = vmatmul.mubr.f32.gmra.mrb[0].mxu0 %v107
    %v197 = vpop.f32.mrb[0].mxu0
    %v198 = vadd.f32 %v129, %v197
    %v199 = vpop.f32.mrb[0].mxu0
    %200 = vdwg.mxu0
    %v201 = vmul.f32 %v198, 0.5
    %v202 = vtanh.pop %v201
    %v203 = vmul.f32 %v202, 0.5
    %v204 = vadd.f32 %v203, 0.5
    %v205 = vld [vmem:[#allocation5] sm:$0xff]
    %v206 = vld [vmem:[#allocation5 + $0x8] sm:$0xff]
    %v207 = vld [vmem:[#allocation5 + $0x10] sm:$0xff]
    %v208 = vld [vmem:[#allocation5 + $0x18] sm:$0xff]
    %v209 = vld [vmem:[#allocation5 + $0x20] sm:$0xff]
    %v210 = vld [vmem:[#allocation5 + $0x28] sm:$0xff]
    %v211 = vld [vmem:[#allocation5 + $0x30] sm:$0xff]
    %v212 = vld [vmem:[#allocation5 + $0x38] sm:$0xff]
    %v213 = vld [vmem:[#allocation5 + $0x40] sm:$0xff]
    %v214 = vld [vmem:[#allocation5 + $0x48] sm:$0xff]
    %v215 = vld [vmem:[#allocation5 + $0x50] sm:$0xff]
    %v216 = vld [vmem:[#allocation5 + $0x58] sm:$0xff]
    %v217 = vld [vmem:[#allocation5 + $0x60] sm:$0xff]
    %v218 = vld [vmem:[#allocation5 + $0x68] sm:$0xff]
    %v219 = vld [vmem:[#allocation5 + $0x70] sm:$0xff]
    %v220 = vld [vmem:[#allocation5 + $0x78] sm:$0xff]
    %v221 = vld [vmem:[%s4] sm:$0x1]
    %v223 = vlaneseq
    %v224 = vshrl.u32 %v223, 7
    %v225 = vsub.s32 0, %v224
    %v226 = vrot.slane %v221, %v225
    %228 = vmatprep.subr.mxu0 0.0
    %229 = vmatpush1.msra.mxu0 %v205
    %230 = vmatprep.subr.mxu0 0.0
    %231 = vmatpush1.msra.mxu0 %v206
    %232 = vmatprep.subr.mxu0 0.0
    %233 = vmatpush1.msra.mxu0 %v207
    %234 = vmatprep.subr.mxu0 0.0
    %235 = vmatpush1.msra.mxu0 %v208
    %236 = vmatprep.subr.mxu0 0.0
    %237 = vmatpush1.msra.mxu0 %v209
    %238 = vmatprep.subr.mxu0 0.0
    %239 = vmatpush1.msra.mxu0 %v210
    %240 = vmatprep.subr.mxu0 0.0
    %241 = vmatpush1.msra.mxu0 %v211
    %242 = vmatprep.subr.mxu0 0.0
    %243 = vmatpush1.msra.mxu0 %v212
    %244 = vmatprep.subr.mxu0 0.0
    %245 = vmatpush1.msra.mxu0 %v213
    %246 = vmatprep.subr.mxu0 0.0
    %247 = vmatpush1.msra.mxu0 %v214
    %248 = vmatprep.subr.mxu0 0.0
    %249 = vmatpush1.msra.mxu0 %v215
    %250 = vmatprep.subr.mxu0 0.0
    %251 = vmatpush1.msra.mxu0 %v216
    %252 = vmatprep.subr.mxu0 0.0
    %253 = vmatpush1.msra.mxu0 %v217
    %254 = vmatprep.subr.mxu0 0.0
    %255 = vmatpush1.msra.mxu0 %v218
    %256 = vmatprep.subr.mxu0 0.0
    %257 = vmatpush1.msra.mxu0 %v219
    %258 = vmatprep.subr.mxu0 0.0
    %259 = vmatpush1.msra.mxu0 %v220
    %260 = vmatprep.subr.mxu0 0.0
    %261 = vmatpush1.msra.mxu0 0.0
    %262 = vmatprep.subr.mxu0 0.0
    %263 = vmatpush1.msra.mxu0 0.0
    %264 = vmatprep.subr.mxu0 0.0
    %265 = vmatpush1.msra.mxu0 0.0
    %266 = vmatprep.subr.mxu0 0.0
    %267 = vmatpush1.msra.mxu0 0.0
    %268 = vmatprep.subr.mxu0 0.0
    %269 = vmatpush1.msra.mxu0 0.0
    %270 = vmatprep.subr.mxu0 0.0
    %271 = vmatpush1.msra.mxu0 0.0
    %272 = vmatprep.subr.mxu0 0.0
    %273 = vmatpush1.msra.mxu0 0.0
    %274 = vmatprep.subr.mxu0 0.0
    %275 = vmatpush1.msra.mxu0 0.0
    %276 = vmatprep.subr.mxu0 0.0
    %277 = vmatpush1.msra.mxu0 0.0
    %278 = vmatprep.subr.mxu0 0.0
    %279 = vmatpush1.msra.mxu0 0.0
    %280 = vmatprep.subr.mxu0 0.0
    %281 = vmatpush1.msra.mxu0 0.0
    %282 = vmatprep.subr.mxu0 0.0
    %283 = vmatpush1.msra.mxu0 0.0
    %284 = vmatprep.subr.mxu0 0.0
    %285 = vmatpush1.msra.mxu0 0.0
    %286 = vmatprep.subr.mxu0 0.0
    %287 = vmatpush1.msra.mxu0 0.0
    %288 = vmatprep.subr.mxu0 0.0
    %289 = vmatpush1.msra.mxu0 0.0
    %290 = vmatprep.subr.mxu0 0.0
    %291 = vmatpush1.msra.mxu0 0.0
    %292 = vmatprep.mubr.f32.mxu0 0.0
    %293 = vmatmul.mubr.f32.gmra.mrb[0].mxu0 %v204
    %v294 = vpop.f32.mrb[0].mxu0
    %v295 = vadd.f32 %v226, %v294
    %v296 = vpop.f32.mrb[0].mxu0
    %297 = vdwg.mxu0
    %v298 = vmul.f32 %v295, 0.5
    %v299 = vtanh.pop %v298
    %v300 = vmul.f32 %v299, 0.5
    %v301 = vadd.f32 %v300, 0.5
    %v302 = vld [vmem:[#allocation7] sm:$0xff]
    %v303 = vld [vmem:[#allocation7 + $0x8] sm:$0xff]
    %v304 = vld [vmem:[#allocation7 + $0x10] sm:$0xff]
    %v305 = vld [vmem:[#allocation7 + $0x18] sm:$0xff]
    %v306 = vld [vmem:[#allocation7 + $0x20] sm:$0xff]
    %v307 = vld [vmem:[#allocation7 + $0x28] sm:$0xff]
    %v308 = vld [vmem:[#allocation7 + $0x30] sm:$0xff]
    %v309 = vld [vmem:[#allocation7 + $0x38] sm:$0xff]
    %v310 = vld [vmem:[#allocation7 + $0x40] sm:$0xff]
    %v311 = vld [vmem:[#allocation7 + $0x48] sm:$0xff]
    %v312 = vld [vmem:[#allocation7 + $0x50] sm:$0xff]
    %v313 = vld [vmem:[#allocation7 + $0x58] sm:$0xff]
    %v314 = vld [vmem:[#allocation7 + $0x60] sm:$0xff]
    %v315 = vld [vmem:[#allocation7 + $0x68] sm:$0xff]
    %v316 = vld [vmem:[#allocation7 + $0x70] sm:$0xff]
    %v317 = vld [vmem:[#allocation7 + $0x78] sm:$0xff]
    %v318 = vld [vmem:[%s6] sm:$0x1]
    %v320 = vlaneseq
    %v321 = vshrl.u32 %v320, 7
    %v322 = vsub.s32 0, %v321
    %v323 = vrot.slane %v318, %v322
    %325 = vmatprep.subr.mxu0 0.0
    %326 = vmatpush1.msra.mxu0 %v302
    %327 = vmatprep.subr.mxu0 0.0
    %328 = vmatpush1.msra.mxu0 %v303
    %329 = vmatprep.subr.mxu0 0.0
    %330 = vmatpush1.msra.mxu0 %v304
    %331 = vmatprep.subr.mxu0 0.0
    %332 = vmatpush1.msra.mxu0 %v305
    %333 = vmatprep.subr.mxu0 0.0
    %334 = vmatpush1.msra.mxu0 %v306
    %335 = vmatprep.subr.mxu0 0.0
    %336 = vmatpush1.msra.mxu0 %v307
    %337 = vmatprep.subr.mxu0 0.0
    %338 = vmatpush1.msra.mxu0 %v308
    %339 = vmatprep.subr.mxu0 0.0
    %340 = vmatpush1.msra.mxu0 %v309
    %341 = vmatprep.subr.mxu0 0.0
    %342 = vmatpush1.msra.mxu0 %v310
    %343 = vmatprep.subr.mxu0 0.0
    %344 = vmatpush1.msra.mxu0 %v311
    %345 = vmatprep.subr.mxu0 0.0
    %346 = vmatpush1.msra.mxu0 %v312
    %347 = vmatprep.subr.mxu0 0.0
    %348 = vmatpush1.msra.mxu0 %v313
    %349 = vmatprep.subr.mxu0 0.0
    %350 = vmatpush1.msra.mxu0 %v314
    %351 = vmatprep.subr.mxu0 0.0
    %352 = vmatpush1.msra.mxu0 %v315
    %353 = vmatprep.subr.mxu0 0.0
    %354 = vmatpush1.msra.mxu0 %v316
    %355 = vmatprep.subr.mxu0 0.0
    %356 = vmatpush1.msra.mxu0 %v317
    %357 = vmatprep.subr.mxu0 0.0
    %358 = vmatpush1.msra.mxu0 0.0
    %359 = vmatprep.subr.mxu0 0.0
    %360 = vmatpush1.msra.mxu0 0.0
    %361 = vmatprep.subr.mxu0 0.0
    %362 = vmatpush1.msra.mxu0 0.0
    %363 = vmatprep.subr.mxu0 0.0
    %364 = vmatpush1.msra.mxu0 0.0
    %365 = vmatprep.subr.mxu0 0.0
    %366 = vmatpush1.msra.mxu0 0.0
    %367 = vmatprep.subr.mxu0 0.0
    %368 = vmatpush1.msra.mxu0 0.0
    %369 = vmatprep.subr.mxu0 0.0
    %370 = vmatpush1.msra.mxu0 0.0
    %371 = vmatprep.subr.mxu0 0.0
    %372 = vmatpush1.msra.mxu0 0.0
    %373 = vmatprep.subr.mxu0 0.0
    %374 = vmatpush1.msra.mxu0 0.0
    %375 = vmatprep.subr.mxu0 0.0
    %376 = vmatpush1.msra.mxu0 0.0
    %377 = vmatprep.subr.mxu0 0.0
    %378 = vmatpush1.msra.mxu0 0.0
    %379 = vmatprep.subr.mxu0 0.0
    %380 = vmatpush1.msra.mxu0 0.0
    %381 = vmatprep.subr.mxu0 0.0
    %382 = vmatpush1.msra.mxu0 0.0
    %383 = vmatprep.subr.mxu0 0.0
    %384 = vmatpush1.msra.mxu0 0.0
    %385 = vmatprep.subr.mxu0 0.0
    %386 = vmatpush1.msra.mxu0 0.0
    %387 = vmatprep.subr.mxu0 0.0
    %388 = vmatpush1.msra.mxu0 0.0
    %389 = vmatprep.mubr.f32.mxu0 0.0
    %390 = vmatmul.mubr.f32.gmra.mrb[0].mxu0 %v301
    %v391 = vpop.f32.mrb[0].mxu0
    %v392 = vadd.f32 %v323, %v391
    %v393 = vpop.f32.mrb[0].mxu0
    %394 = vdwg.mxu0
    %v395 = vmul.f32 %v392, 0.5
    %v396 = vtanh.pop %v395
    %v397 = vmul.f32 %v396, 0.5
    %v398 = vadd.f32 %v397, 0.5
    %v399 = vld [vmem:[#allocation8] sm:$0xff]
    %v400 = vld [vmem:[#allocation8 + $0x8] sm:$0xff]
    %v401 = vld [vmem:[#allocation8 + $0x10] sm:$0xff]
    %v402 = vld [vmem:[#allocation8 + $0x18] sm:$0xff]
    %v403 = vld [vmem:[#allocation8 + $0x20] sm:$0xff]
    %v404 = vld [vmem:[#allocation8 + $0x28] sm:$0xff]
    %v405 = vld [vmem:[#allocation8 + $0x30] sm:$0xff]
    %v406 = vld [vmem:[#allocation8 + $0x38] sm:$0xff]
    %v407 = vld [vmem:[#allocation8 + $0x40] sm:$0xff]
    %v408 = vld [vmem:[#allocation8 + $0x48] sm:$0xff]
    %v409 = vld [vmem:[#allocation8 + $0x50] sm:$0xff]
    %v410 = vld [vmem:[#allocation8 + $0x58] sm:$0xff]
    %v411 = vld [vmem:[#allocation8 + $0x60] sm:$0xff]
    %v412 = vld [vmem:[#allocation8 + $0x68] sm:$0xff]
    %v413 = vld [vmem:[#allocation8 + $0x70] sm:$0xff]
    %v414 = vld [vmem:[#allocation8 + $0x78] sm:$0xff]
    %v415 = vld [vmem:[%s8] sm:$0x1]
    %v417 = vlaneseq
    %v418 = vshrl.u32 %v417, 7
    %v419 = vsub.s32 0, %v418
    %v420 = vrot.slane %v415, %v419
    %422 = vmatprep.subr.mxu0 0.0
    %423 = vmatpush1.msra.mxu0 %v399
    %424 = vmatprep.subr.mxu0 0.0
    %425 = vmatpush1.msra.mxu0 %v400
    %426 = vmatprep.subr.mxu0 0.0
    %427 = vmatpush1.msra.mxu0 %v401
    %428 = vmatprep.subr.mxu0 0.0
    %429 = vmatpush1.msra.mxu0 %v402
    %430 = vmatprep.subr.mxu0 0.0
    %431 = vmatpush1.msra.mxu0 %v403
    %432 = vmatprep.subr.mxu0 0.0
    %433 = vmatpush1.msra.mxu0 %v404
    %434 = vmatprep.subr.mxu0 0.0
    %435 = vmatpush1.msra.mxu0 %v405
    %436 = vmatprep.subr.mxu0 0.0
    %437 = vmatpush1.msra.mxu0 %v406
    %438 = vmatprep.subr.mxu0 0.0
    %439 = vmatpush1.msra.mxu0 %v407
    %440 = vmatprep.subr.mxu0 0.0
    %441 = vmatpush1.msra.mxu0 %v408
    %442 = vmatprep.subr.mxu0 0.0
    %443 = vmatpush1.msra.mxu0 %v409
    %444 = vmatprep.subr.mxu0 0.0
    %445 = vmatpush1.msra.mxu0 %v410
    %446 = vmatprep.subr.mxu0 0.0
    %447 = vmatpush1.msra.mxu0 %v411
    %448 = vmatprep.subr.mxu0 0.0
    %449 = vmatpush1.msra.mxu0 %v412
    %450 = vmatprep.subr.mxu0 0.0
    %451 = vmatpush1.msra.mxu0 %v413
    %452 = vmatprep.subr.mxu0 0.0
    %453 = vmatpush1.msra.mxu0 %v414
    %454 = vmatprep.subr.mxu0 0.0
    %455 = vmatpush1.msra.mxu0 0.0
    %456 = vmatprep.subr.mxu0 0.0
    %457 = vmatpush1.msra.mxu0 0.0
    %458 = vmatprep.subr.mxu0 0.0
    %459 = vmatpush1.msra.mxu0 0.0
    %460 = vmatprep.subr.mxu0 0.0
    %461 = vmatpush1.msra.mxu0 0.0
    %462 = vmatprep.subr.mxu0 0.0
    %463 = vmatpush1.msra.mxu0 0.0
    %464 = vmatprep.subr.mxu0 0.0
    %465 = vmatpush1.msra.mxu0 0.0
    %466 = vmatprep.subr.mxu0 0.0
    %467 = vmatpush1.msra.mxu0 0.0
    %468 = vmatprep.subr.mxu0 0.0
    %469 = vmatpush1.msra.mxu0 0.0
    %470 = vmatprep.subr.mxu0 0.0
    %471 = vmatpush1.msra.mxu0 0.0
    %472 = vmatprep.subr.mxu0 0.0
    %473 = vmatpush1.msra.mxu0 0.0
    %474 = vmatprep.subr.mxu0 0.0
    %475 = vmatpush1.msra.mxu0 0.0
    %476 = vmatprep.subr.mxu0 0.0
    %477 = vmatpush1.msra.mxu0 0.0
    %478 = vmatprep.subr.mxu0 0.0
    %479 = vmatpush1.msra.mxu0 0.0
    %480 = vmatprep.subr.mxu0 0.0
    %481 = vmatpush1.msra.mxu0 0.0
    %482 = vmatprep.subr.mxu0 0.0
    %483 = vmatpush1.msra.mxu0 0.0
    %484 = vmatprep.subr.mxu0 0.0
    %485 = vmatpush1.msra.mxu0 0.0
    %486 = vmatprep.mubr.f32.mxu0 0.0
    %487 = vmatmul.mubr.f32.gmra.mrb[0].mxu0 %v398
    %v488 = vpop.f32.mrb[0].mxu0
    %v489 = vadd.f32 %v420, %v488
    %v490 = vpop.f32.mrb[0].mxu0
    %491 = vdwg.mxu0
    %v492 = vmul.f32 %v489, 0.5
    %v493 = vtanh.pop %v492
    %v494 = vmul.f32 %v493, 0.5
    %v495 = vadd.f32 %v494, 0.5
    %v496 = vld [vmem:[#allocation10] sm:$0xff]
    %v497 = vld [vmem:[#allocation10 + $0x8] sm:$0xff]
    %v498 = vld [vmem:[#allocation10 + $0x10] sm:$0xff]
    %v499 = vld [vmem:[#allocation10 + $0x18] sm:$0xff]
    %v500 = vld [vmem:[#allocation10 + $0x20] sm:$0xff]
    %v501 = vld [vmem:[#allocation10 + $0x28] sm:$0xff]
    %v502 = vld [vmem:[#allocation10 + $0x30] sm:$0xff]
    %v503 = vld [vmem:[#allocation10 + $0x38] sm:$0xff]
    %v504 = vld [vmem:[#allocation10 + $0x40] sm:$0xff]
    %v505 = vld [vmem:[#allocation10 + $0x48] sm:$0xff]
    %v506 = vld [vmem:[#allocation10 + $0x50] sm:$0xff]
    %v507 = vld [vmem:[#allocation10 + $0x58] sm:$0xff]
    %v508 = vld [vmem:[#allocation10 + $0x60] sm:$0xff]
    %v509 = vld [vmem:[#allocation10 + $0x68] sm:$0xff]
    %v510 = vld [vmem:[#allocation10 + $0x70] sm:$0xff]
    %v511 = vld [vmem:[#allocation10 + $0x78] sm:$0xff]
    %v512 = vld [vmem:[%s10] sm:$0x1]
    %v514 = vlaneseq
    %v515 = vshrl.u32 %v514, 7
    %v516 = vsub.s32 0, %v515
    %v517 = vrot.slane %v512, %v516
    %519 = vmatprep.subr.mxu0 0.0
    %520 = vmatpush1.msra.mxu0 %v496
    %521 = vmatprep.subr.mxu0 0.0
    %522 = vmatpush1.msra.mxu0 %v497
    %523 = vmatprep.subr.mxu0 0.0
    %524 = vmatpush1.msra.mxu0 %v498
    %525 = vmatprep.subr.mxu0 0.0
    %526 = vmatpush1.msra.mxu0 %v499
    %527 = vmatprep.subr.mxu0 0.0
    %528 = vmatpush1.msra.mxu0 %v500
    %529 = vmatprep.subr.mxu0 0.0
    %530 = vmatpush1.msra.mxu0 %v501
    %531 = vmatprep.subr.mxu0 0.0
    %532 = vmatpush1.msra.mxu0 %v502
    %533 = vmatprep.subr.mxu0 0.0
    %534 = vmatpush1.msra.mxu0 %v503
    %535 = vmatprep.subr.mxu0 0.0
    %536 = vmatpush1.msra.mxu0 %v504
    %537 = vmatprep.subr.mxu0 0.0
    %538 = vmatpush1.msra.mxu0 %v505
    %539 = vmatprep.subr.mxu0 0.0
    %540 = vmatpush1.msra.mxu0 %v506
    %541 = vmatprep.subr.mxu0 0.0
    %542 = vmatpush1.msra.mxu0 %v507
    %543 = vmatprep.subr.mxu0 0.0
    %544 = vmatpush1.msra.mxu0 %v508
    %545 = vmatprep.subr.mxu0 0.0
    %546 = vmatpush1.msra.mxu0 %v509
    %547 = vmatprep.subr.mxu0 0.0
    %548 = vmatpush1.msra.mxu0 %v510
    %549 = vmatprep.subr.mxu0 0.0
    %550 = vmatpush1.msra.mxu0 %v511
    %551 = vmatprep.subr.mxu0 0.0
    %552 = vmatpush1.msra.mxu0 0.0
    %553 = vmatprep.subr.mxu0 0.0
    %554 = vmatpush1.msra.mxu0 0.0
    %555 = vmatprep.subr.mxu0 0.0
    %556 = vmatpush1.msra.mxu0 0.0
    %557 = vmatprep.subr.mxu0 0.0
    %558 = vmatpush1.msra.mxu0 0.0
    %559 = vmatprep.subr.mxu0 0.0
    %560 = vmatpush1.msra.mxu0 0.0
    %561 = vmatprep.subr.mxu0 0.0
    %562 = vmatpush1.msra.mxu0 0.0
    %563 = vmatprep.subr.mxu0 0.0
    %564 = vmatpush1.msra.mxu0 0.0
    %565 = vmatprep.subr.mxu0 0.0
    %566 = vmatpush1.msra.mxu0 0.0
    %567 = vmatprep.subr.mxu0 0.0
    %568 = vmatpush1.msra.mxu0 0.0
    %569 = vmatprep.subr.mxu0 0.0
    %570 = vmatpush1.msra.mxu0 0.0
    %571 = vmatprep.subr.mxu0 0.0
    %572 = vmatpush1.msra.mxu0 0.0
    %573 = vmatprep.subr.mxu0 0.0
    %574 = vmatpush1.msra.mxu0 0.0
    %575 = vmatprep.subr.mxu0 0.0
    %576 = vmatpush1.msra.mxu0 0.0
    %577 = vmatprep.subr.mxu0 0.0
    %578 = vmatpush1.msra.mxu0 0.0
    %579 = vmatprep.subr.mxu0 0.0
    %580 = vmatpush1.msra.mxu0 0.0
    %581 = vmatprep.subr.mxu0 0.0
    %582 = vmatpush1.msra.mxu0 0.0
    %583 = vmatprep.mubr.f32.mxu0 0.0
    %584 = vmatmul.mubr.f32.gmra.mrb[0].mxu0 %v495
    %v585 = vpop.f32.mrb[0].mxu0
    %v586 = vadd.f32 %v517, %v585
    %v587 = vpop.f32.mrb[0].mxu0
    %588 = vdwg.mxu0
    %589 = vst [vmem:[#allocation11] sm:$0xff] %v586
    // Predicated region
    $region66: #{fwd.1} parent=1 // pred_check
      _
    $region67: #{fwd.1} parent=1 // pred_check_branch
      %591 = sbr.rel (0) target = $region69
    $region68: #{fwd.1} parent=1 // pred_region
      %s593 = ssub.s32 128, 128
      %594 = vsyncadd [#allocation4], %s593
      %s596 = sshll.u32 [#allocation11], 4
      %s597 = int_to_ptr.vmem [resolvable:$true] %s596
      %599 = dma.vmem_to_hbm [thread:$0]  %s597, 128, %s11, [#allocation4]
    $region69: #{fwd.1} parent=1 // pred_fallthru
      _
    // Predicated region
    $region70: #{fwd.1} parent=1 // pred_check
      _
    $region71: #{fwd.1} parent=1 // pred_check_branch
      %601 = sbr.rel (0) target = $region73
    $region72: #{fwd.1} parent=1 // pred_region
      %602 = dma.done [#allocation4], 128
    $region73: #{fwd.1} parent=1 // pred_fallthru
      _
    %603 = vsyncpa [#allocation3], 1
    %604 = vsyncpa [#allocation6], 1
    %605 = vsyncpa [#allocation9], 1
    %606 = vsyncpa [#allocation4], 1

</llo_original>
